<compile_context>
chip_gen: v7x
topology: tpu7x:2x2x1
jax: 0.10.0
libtpu: 0.0.40
codegen_flags: <defaults>
</compile_context>

<pallas_src>
import functools

import jax
import jax.numpy as jnp
from jax import lax
from jax.experimental import pallas as pl
from jax.experimental.pallas import tpu as pltpu


def _space_to_depth_kernel(x_ref, sel_ref, o_ref, *, W, W2):
    """One grid step = one (batch, row-tile).

    x_ref:   (R_t, 2*W)       rows are (c, h2) pairs; lanes [0:W] hold the
                              even-H source row, lanes [W:2W] the odd-H row.
    sel_ref: (W, 2*W2)        0/1 selection matrix, columns = [even W | odd W].
    o_ref:   (2, 2, R_t, W2)  dims = (w_off, h_off, row, w2).
    """
    xv = x_ref[...]                      # (R_t, 2W), native dtype
    sel = sel_ref[...]                   # (W, 2W2),  native dtype, 0/1 entries

    # One fused MXU matmul per H-parity. Exact: sel is 0/1 and the
    # accumulation is f32 (each output element is one input element + zeros).
    r_h0 = jnp.dot(xv[:, :W], sel, preferred_element_type=jnp.float32)  # (R_t, 2W2)
    r_h1 = jnp.dot(xv[:, W:], sel, preferred_element_type=jnp.float32)  # (R_t, 2W2)

    # Assemble the whole output block (w_off, h_off, row, w2) and store it with
    # a single full-block write (no ref int-indexing / strided ref ops).
    blk = jnp.stack(
        [
            jnp.stack([r_h0[:, :W2], r_h1[:, :W2]], axis=0),   # w_off = 0
            jnp.stack([r_h0[:, W2:], r_h1[:, W2:]], axis=0),   # w_off = 1
        ],
        axis=0,
    )                                    # (2, 2, R_t, W2)
    o_ref[...] = blk.astype(o_ref.dtype)


def _pick_row_tile(num_rows, row_bytes, target_bytes):
    """Largest divisor of num_rows whose input tile fits target_bytes and that
    is sublane-friendly (multiple of 8) or the full extent."""
    candidates = [
        d for d in range(1, num_rows + 1)
        if num_rows % d == 0 and (d == num_rows or d % 8 == 0)
    ]
    fitting = [d for d in candidates if d * row_bytes <= target_bytes]
    return fitting[-1] if fitting else candidates[0]


def space_to_depth(x, *, row_tile_target_bytes=2 << 20):
    """Pallas equivalent of space_to_depth().forward(x), x in NCHW."""
    B, C, H, W = x.shape
    assert H % 2 == 0 and W % 2 == 0, "H and W must be even"
    # TODO(synk): integer dtypes would need a non-matmul, bit-exact path.
    assert jnp.issubdtype(x.dtype, jnp.floating), "float dtypes only"
    H2, W2 = H // 2, W // 2
    R = C * H2                                     # output rows per (w_off,h_off)

    itemsize = jnp.dtype(x.dtype).itemsize
    row_bytes = 2 * W * itemsize                   # one packed row (both H-parities)
    R_t = _pick_row_tile(R, row_bytes, row_tile_target_bytes)
    n_r = R // R_t

    # Free reshape: (B, C, H2, 2, W) with (C, H2) and (2, W) merged.
    x3 = x.reshape(B, R, 2 * W)

    # 0/1 selection matrix, computed once per call, resident in VMEM.
    # Columns [0:W2] pick even source columns, [W2:2W2] pick odd ones.
    rows_i = lax.broadcasted_iota(jnp.int32, (W, W2), 0)
    cols_i = lax.broadcasted_iota(jnp.int32, (W, W2), 1)
    sel = jnp.concatenate(
        [rows_i == 2 * cols_i, rows_i == 2 * cols_i + 1], axis=1
    ).astype(x.dtype)                              # (W, 2*W2)

    kernel = functools.partial(_space_to_depth_kernel, W=W, W2=W2)

    in_tile = R_t * 2 * W * itemsize
    out_tile = 4 * R_t * W2 * itemsize             # == in_tile
    sel_bytes = W * 2 * W2 * itemsize
    vmem_limit = int(min(
        48 << 20,                                  # headroom on v7x (64 MiB VMEM)
        max(32 << 20, 2 * (in_tile + out_tile) + sel_bytes + (4 << 20)),
    ))

    out6 = pl.pallas_call(
        kernel,
        out_shape=jax.ShapeDtypeStruct((B, 2, 2, R, W2), x.dtype),
        grid=(B, n_r),
        in_specs=[
            pl.BlockSpec((None, R_t, 2 * W), lambda b, r: (b, r, 0)),
            pl.BlockSpec((W, 2 * W2), lambda b, r: (0, 0)),   # constant -> DMA'd once
        ],
        out_specs=pl.BlockSpec(
            (None, 2, 2, R_t, W2), lambda b, r: (b, 0, 0, r, 0)
        ),
        compiler_params=pltpu.CompilerParams(
            dimension_semantics=("parallel", "parallel"),
            vmem_limit_bytes=vmem_limit,
        ),
        cost_estimate=pl.CostEstimate(
            flops=8 * B * R * W * W2,
            transcendentals=0,
            bytes_accessed=2 * B * C * H * W * itemsize + sel_bytes,
        ),
    )(x3, sel)

    # Free reshape: (B, 2, 2, C*H2, W2) -> (B, 4C, H2, W2)
    # (channel = (2*w_off + h_off)*C + c, matching the torch.cat order).
    return out6.reshape(B, 4 * C, H2, W2)


def space_to_depth_ref(x):
    """Pure-JAX reference, mirrors the PyTorch forward exactly."""
    return jnp.concatenate(
        [x[..., ::2, ::2], x[..., 1::2, ::2], x[..., ::2, 1::2], x[..., 1::2, 1::2]],
        axis=1,
    )


if __name__ == "__main__":
    key = jax.random.PRNGKey(0)
    B, C, H, W = 2, 4, 16, 16  # out = (2, 16, 8, 8)

    x = jax.random.normal(key, (B, C, H, W), dtype=jnp.float32)

    out = jax.block_until_ready(space_to_depth(x))
    ref = space_to_depth_ref(x)

    assert out.shape == ref.shape, (out.shape, ref.shape)
    assert out.dtype == ref.dtype, (out.dtype, ref.dtype)
    assert bool(jnp.allclose(out, ref, rtol=0.0, atol=1e-6)), (
        "Pallas space_to_depth mismatch vs reference"
    )

    print("KERNEL_OK")
</pallas_src>

<mosaic_0001>
module attributes {stable_mosaic.version = 11 : i64} {
  func.func @_space_to_depth_kernel(%arg0: i32, %arg1: i32, %arg2: memref<1x32x32xf32, #tpu.memory_space<vmem>>, %arg3: memref<16x16xf32, #tpu.memory_space<vmem>>, %arg4: memref<1x2x2x32x8xf32, #tpu.memory_space<vmem>>) attributes {dimension_semantics = [#tpu.dimension_semantics<parallel>, #tpu.dimension_semantics<parallel>], iteration_bounds = array<i64: 2, 1>, scalar_prefetch = 0 : i64, scratch_operands = 0 : i64, tpu.core_type = #tpu.core_type<tc>, window_params = [{transform_indices = @transform_0, window_bounds = array<i64: 1, 32, 32>}, {pipeline_mode = #tpu.pipeline_mode<synchronous>, transform_indices = @transform_1, window_bounds = array<i64: 16, 16>}, {transform_indices = @transform_2, window_bounds = array<i64: 1, 2, 2, 32, 8>}]} {
    %c0 = arith.constant 0 : index
    %c0_0 = arith.constant 0 : index
    %c0_1 = arith.constant 0 : index
    %0 = vector.load %arg2[%c0, %c0_0, %c0_1] : memref<1x32x32xf32, #tpu.memory_space<vmem>>, vector<1x32x32xf32>
    %1 = vector.shape_cast %0 : vector<1x32x32xf32> to vector<32x32xf32>
    %c0_2 = arith.constant 0 : index
    %c0_3 = arith.constant 0 : index
    %2 = vector.load %arg3[%c0_2, %c0_3] : memref<16x16xf32, #tpu.memory_space<vmem>>, vector<16x16xf32>
    %3 = vector.extract_strided_slice %1 {offsets = [0, 0], sizes = [32, 16], strides = [1, 1]} : vector<32x32xf32> to vector<32x16xf32>
    %cst = arith.constant dense<0.000000e+00> : vector<32x16xf32>
    %4 = tpu.matmul %3, %2, %cst {dimension_numbers = #tpu.dot_dimension_numbers<[1], [0], [0], [1], [0, 0, 1, 1], [], []>} : vector<32x16xf32>, vector<16x16xf32>, vector<32x16xf32> -> vector<32x16xf32>
    %5 = vector.extract_strided_slice %1 {offsets = [0, 16], sizes = [32, 16], strides = [1, 1]} : vector<32x32xf32> to vector<32x16xf32>
    %cst_4 = arith.constant dense<0.000000e+00> : vector<32x16xf32>
    %6 = tpu.matmul %5, %2, %cst_4 {dimension_numbers = #tpu.dot_dimension_numbers<[1], [0], [0], [1], [0, 0, 1, 1], [], []>} : vector<32x16xf32>, vector<16x16xf32>, vector<32x16xf32> -> vector<32x16xf32>
    %7 = vector.extract_strided_slice %4 {offsets = [0, 0], sizes = [32, 8], strides = [1, 1]} : vector<32x16xf32> to vector<32x8xf32>
    %8 = vector.extract_strided_slice %6 {offsets = [0, 0], sizes = [32, 8], strides = [1, 1]} : vector<32x16xf32> to vector<32x8xf32>
    %9 = vector.shape_cast %7 : vector<32x8xf32> to vector<1x32x8xf32>
    %10 = vector.shape_cast %8 : vector<32x8xf32> to vector<1x32x8xf32>
    %11 = tpu.concatenate %9, %10 in 0 : vector<1x32x8xf32>, vector<1x32x8xf32> -> vector<2x32x8xf32>
    %12 = vector.extract_strided_slice %4 {offsets = [0, 8], sizes = [32, 8], strides = [1, 1]} : vector<32x16xf32> to vector<32x8xf32>
    %13 = vector.extract_strided_slice %6 {offsets = [0, 8], sizes = [32, 8], strides = [1, 1]} : vector<32x16xf32> to vector<32x8xf32>
    %14 = vector.shape_cast %12 : vector<32x8xf32> to vector<1x32x8xf32>
    %15 = vector.shape_cast %13 : vector<32x8xf32> to vector<1x32x8xf32>
    %16 = tpu.concatenate %14, %15 in 0 : vector<1x32x8xf32>, vector<1x32x8xf32> -> vector<2x32x8xf32>
    %17 = vector.shape_cast %11 : vector<2x32x8xf32> to vector<1x2x32x8xf32>
    %18 = vector.shape_cast %16 : vector<2x32x8xf32> to vector<1x2x32x8xf32>
    %19 = tpu.concatenate %17, %18 in 0 : vector<1x2x32x8xf32>, vector<1x2x32x8xf32> -> vector<2x2x32x8xf32>
    %c0_5 = arith.constant 0 : index
    %c0_6 = arith.constant 0 : index
    %c0_7 = arith.constant 0 : index
    %c0_8 = arith.constant 0 : index
    %c0_9 = arith.constant 0 : index
    %20 = vector.load %arg4[%c0_5, %c0_6, %c0_7, %c0_8, %c0_9] : memref<1x2x2x32x8xf32, #tpu.memory_space<vmem>>, vector<1x2x2x32x8xf32>
    %21 = vector.shape_cast %20 : vector<1x2x2x32x8xf32> to vector<2x2x32x8xf32>
    %22 = vector.shape_cast %19 : vector<2x2x32x8xf32> to vector<1x2x2x32x8xf32>
    tpu.vector_store %arg4[%c0_5, %c0_6, %c0_7, %c0_8, %c0_9], %22 {strides = array<i32>} : memref<1x2x2x32x8xf32, #tpu.memory_space<vmem>>, vector<1x2x2x32x8xf32>,
    return
  }
  func.func @transform_0(%arg0: i32, %arg1: i32) -> (i32, i32, i32) {
    %c0_i32 = arith.constant 0 : i32
    %c0_i32_0 = arith.constant 0 : i32
    return %arg0, %arg1, %c0_i32 : i32, i32, i32
  }
  func.func @transform_1(%arg0: i32, %arg1: i32) -> (i32, i32) {
    %c0_i32 = arith.constant 0 : i32
    %c0_i32_0 = arith.constant 0 : i32
    %c0_i32_1 = arith.constant 0 : i32
    return %c0_i32, %c0_i32_0 : i32, i32
  }
  func.func @transform_2(%arg0: i32, %arg1: i32) -> (i32, i32, i32, i32, i32) {
    %c0_i32 = arith.constant 0 : i32
    %c0_i32_0 = arith.constant 0 : i32
    %c0_i32_1 = arith.constant 0 : i32
    %c0_i32_2 = arith.constant 0 : i32
    return %arg0, %c0_i32, %c0_i32_0, %arg1, %c0_i32_1 : i32, i32, i32, i32, i32
  }
}

</mosaic_0001>

<llo_original>
// kernel: tpu_custom_call.1
$region0: #{tpu_custom_call.1}
  #allocation0 [shape = 'u32[]', space=smem, size = 0x4, offset = 0x4, fixed_abs, tag = 'smem constant byte address 0x4 - core index']
  #allocation1 [shape = 'u32[144,128]{1,0:T(1,128)}', space=vmem, size = 0x12000, scoped, tag = 'internal scratch']
  %s0 = inlined_call_operand.hbm [shape: f32[2,32,32], index: 0, kind: input, shape index: {}]
  %s1 = inlined_call_operand.hbm [shape: f32[16,16], index: 1, kind: input, shape index: {}]
  %s2 = inlined_call_operand.vmem [shape: f32[2,2,2,32,8], index: 2, kind: output, shape index: {}]
  %s3 = sld [smem:[#allocation0]]
  $region49: #{tpu_custom_call.1} parent=0
    _
  %s5 = ssub.s32 1, %s3
  %s6 = scalar_select 0, %s5, %s3
  $region1: #{tpu_custom_call.1} parent=0
    #allocation2 [shape = 'u8[32768]{0}', space=vmem, size = 0x8000, scoped, tag = 'input window, operand 0']
    #allocation3 [shape = 's32[2]{0}', space=sflag, size = 0x8, scoped, tag = 'scoped memory for tpu_custom_call.1']
    #allocation4 [shape = 'u8[8192]{0}', space=vmem, size = 0x2000, scoped, tag = 'input window, operand 1, single buffered']
    #allocation5 [shape = 's32[1]{0}', space=sflag, size = 0x4, scoped, tag = 'scoped memory for tpu_custom_call.1']
    %7 = vsyncpa [#allocation3], 0
    %s8 = scalar_lea.sflag [#allocation3], 1
    %9 = vsyncpa %s8, 0
    %10 = vsyncpa [#allocation5], 0
    loop: start=0, step=1, limit=4
    $region2: #{tpu_custom_call.1} parent=1 // loop_pre_header
      _
    $region3: #{tpu_custom_call.1} parent=1 // loop_header
      %s12 = sphi 0, %s16
      %p13 = scmp.ge.s32.totalorder %s12, 4
      %s19 = sphi 0, %s31
      %s20 = sphi 0, %s27
      %s21 = sphi 0, %s19
      %s22 = sphi 0, %s20
      %s23 = sphi 0, %s21
      %s24 = sphi 0, %s22
      %s36 = sphi 0, %s38
      %s39 = sphi 0, %s36
      %s40 = sphi 0, %s39
      %s56 = sphi 0, %s40
      %s60 = sphi 0, %s60
      %s62 = sphi 0, %s60
      %s63 = sphi 0, %s62
      %s77 = sphi 0, %s63
      %s85 = sphi 0, %s87
      %s88 = sphi 0, %s85
      %s89 = sphi 0, %s88
      %s105 = sphi 0, %s89
    $region4: #{tpu_custom_call.1} parent=1 // loop_header_branch
      %15 = sbr.rel (%p13) target = $region8
    $region5: #{tpu_custom_call.1} parent=1 // loop_body
      %s17 = ssub.s32 %s12, 1
      %s18 = ssub.s32 %s12, 2
      %s25 = sadd.s32 1, %s20
      %p26 = scmp.ge.s32.totalorder %s25, 1
      %s27 = scalar_select %p26, 0, %s25
      %s28 = sadd.s32 1, %s19
      %s29 = scalar_select %p26, %s28, %s19
      %p30 = scmp.ge.s32.totalorder %s29, 2
      %s31 = scalar_select %p30, 0, %s29
      %s32 = ssub.s32 %s19, %s31
      %s33 = ssub.s32 %s20, %s27
      %s34 = sor.u32 %s32, %s33
      %p35 = scmp.eq.s32.totalorder %s34, 0
      %s37 = sadd.s32 %s36, 1
      %s38 = scalar_select %p35, %s36, %s37
      %p41 = pneg %p35
      %p42 = scmp.eq.s32.totalorder %s12, 1
      %p43 = por %p41, %p42
      %p44 = scmp.ne.s32.totalorder %s36, %s39
      %p45 = scmp.eq.s32.totalorder %s12, 0
      %p46 = por %p44, %p45
      %p47 = scmp.ne.s32.totalorder %s36, %s39
      %p48 = scmp.eq.s32.totalorder %s17, 1
      %p49 = por %p47, %p48
      %p50 = scmp.ne.s32.totalorder %s39, %s40
      %p51 = scmp.eq.s32.totalorder %s17, 0
      %p52 = por %p50, %p51
      %p53 = scmp.ne.s32.totalorder %s39, %s40
      %p54 = scmp.eq.s32.totalorder %s18, 1
      %p55 = por %p53, %p54
      %p57 = scmp.ne.s32.totalorder %s40, %s56
      %p58 = scmp.eq.s32.totalorder %s18, 0
      %p59 = por %p57, %p58
      %s61 = sadd.s32 %s60, 1
      %p64 = scmp.eq.s32.totalorder %s12, 1
      %p65 = scmp.ne.s32.totalorder %s60, %s62
      %p66 = scmp.eq.s32.totalorder %s12, 0
      %p67 = por %p65, %p66
      %p68 = scmp.ne.s32.totalorder %s60, %s62
      %p69 = scmp.eq.s32.totalorder %s17, 1
      %p70 = por %p68, %p69
      %p71 = scmp.ne.s32.totalorder %s62, %s63
      %p72 = scmp.eq.s32.totalorder %s17, 0
      %p73 = por %p71, %p72
      %p74 = scmp.ne.s32.totalorder %s62, %s63
      %p75 = scmp.eq.s32.totalorder %s18, 1
      %p76 = por %p74, %p75
      %p78 = scmp.ne.s32.totalorder %s63, %s77
      %p79 = scmp.eq.s32.totalorder %s18, 0
      %p80 = por %p78, %p79
      %s81 = ssub.s32 %s19, %s31
      %s82 = ssub.s32 %s20, %s27
      %s83 = sor.u32 %s81, %s82
      %p84 = scmp.eq.s32.totalorder %s83, 0
      %s86 = sadd.s32 %s85, 1
      %s87 = scalar_select %p84, %s85, %s86
      %p90 = pneg %p84
      %p91 = scmp.eq.s32.totalorder %s12, 1
      %p92 = por %p90, %p91
      %p93 = scmp.ne.s32.totalorder %s85, %s88
      %p94 = scmp.eq.s32.totalorder %s12, 0
      %p95 = por %p93, %p94
      %p96 = scmp.ne.s32.totalorder %s85, %s88
      %p97 = scmp.eq.s32.totalorder %s17, 1
      %p98 = por %p96, %p97
      %p99 = scmp.ne.s32.totalorder %s88, %s89
      %p100 = scmp.eq.s32.totalorder %s17, 0
      %p101 = por %p99, %p100
      %p102 = scmp.ne.s32.totalorder %s88, %s89
      %p103 = scmp.eq.s32.totalorder %s18, 1
      %p104 = por %p102, %p103
      %p106 = scmp.ne.s32.totalorder %s89, %s105
      %p107 = scmp.eq.s32.totalorder %s18, 0
      %p108 = por %p106, %p107
      %p109 = scmp.le.s32.totalorder 1, %s12
      %p110 = scmp.lt.s32.totalorder %s12, 3
      %p111 = pnand %p109, %p110
      %p112 = pneg %p111
      // Predicated region
      $region9: #{tpu_custom_call.1} parent=5 // pred_check
        _
      $region10: #{tpu_custom_call.1} parent=5 // pred_check_branch
        %114 = sbr.rel (%p111) target = $region12
      $region11: #{tpu_custom_call.1} parent=5 // pred_region
        %s115 = ssub.s32 %s12, 1
        // Predicated region
        $region13: #{tpu_custom_call.1} parent=11 // pred_check
          %p116 = pneg %p73
        $region14: #{tpu_custom_call.1} parent=11 // pred_check_branch
          %118 = sbr.rel (%p116) target = $region16
        $region15: #{tpu_custom_call.1} parent=11 // pred_region
          %s120 = ssub.s32 256, 256
          %121 = vsyncadd [#allocation5], %s120
          %s122 = sshll.u32 [#allocation4], 4
          %s123 = int_to_ptr.vmem [resolvable:$true] %s122
          %128 = dma.hbm_to_vmem [thread:$0]  %s1, 256, %s123, [#allocation5], 128, 128, 8
        $region16: #{tpu_custom_call.1} parent=11 // pred_fallthru
          _
      $region12: #{tpu_custom_call.1} parent=5 // pred_fallthru
        _
      %p129 = scmp.lt.s32.totalorder %s12, 2
      // Predicated region
      $region17: #{tpu_custom_call.1} parent=5 // pred_check
        %p130 = pneg %p129
      $region18: #{tpu_custom_call.1} parent=5 // pred_check_branch
        %132 = sbr.rel (%p130) target = $region20
      $region19: #{tpu_custom_call.1} parent=5 // pred_region
        // Predicated region
        $region21: #{tpu_custom_call.1} parent=19 // pred_check
          %p133 = pneg %p46
        $region22: #{tpu_custom_call.1} parent=19 // pred_check_branch
          %135 = sbr.rel (%p133) target = $region24
        $region23: #{tpu_custom_call.1} parent=19 // pred_region
          %s136 = sand.u32 %s36, 1
          %s137 = scalar_lea.sflag [#allocation3], %s136
          %s138 = sand.u32 %s36, 1
          %s139 = smul.addr %s138, 32
          %s140 = scalar_lea.vmem [#allocation2], %s139
          %s141 = smul.u32 4, %s20
          %s143 = ssub.s32 512, 512
          %144 = vsyncadd %s137, %s143
          %s145 = smul.addr %s19, 4
          %s146 = sadd.s32 %s141, %s145
          %s147 = smul.addr %s146, 128
          %s148 = scalar_lea.hbm %s0, %s147
          %s149 = sshll.u32 %s140, 4
          %s150 = int_to_ptr.vmem [resolvable:$true] %s149
          %155 = dma.hbm_to_vmem [thread:$0]  %s148, 512, %s150, %s137, 128, 128, 8
        $region24: #{tpu_custom_call.1} parent=19 // pred_fallthru
          _
      $region20: #{tpu_custom_call.1} parent=5 // pred_fallthru
        _
      %p156 = scmp.le.s32.totalorder 1, %s12
      %p157 = scmp.lt.s32.totalorder %s12, 3
      %p158 = pnand %p156, %p157
      %p159 = pneg %p158
      // Predicated region
      $region25: #{tpu_custom_call.1} parent=5 // pred_check
        _
      $region26: #{tpu_custom_call.1} parent=5 // pred_check_branch
        %161 = sbr.rel (%p158) target = $region28
      $region27: #{tpu_custom_call.1} parent=5 // pred_region
        %s162 = ssub.s32 %s12, 1
        %s163 = sand.u32 %s39, 1
        %s164 = scalar_lea.sflag [#allocation3], %s163
        %s165 = sand.u32 %s39, 1
        %s166 = smul.addr %s165, 32
        %s167 = scalar_lea.vmem [#allocation2], %s166
        // Predicated region
        $region29: #{tpu_custom_call.1} parent=27 // pred_check
          %p168 = pneg %p52
        $region30: #{tpu_custom_call.1} parent=27 // pred_check_branch
          %170 = sbr.rel (%p168) target = $region32
        $region31: #{tpu_custom_call.1} parent=27 // pred_region
          %171 = dma.done %s164, 512
        $region32: #{tpu_custom_call.1} parent=27 // pred_fallthru
          _
        // Predicated region
        $region33: #{tpu_custom_call.1} parent=27 // pred_check
          %p172 = pneg %p73
        $region34: #{tpu_custom_call.1} parent=27 // pred_check_branch
          %174 = sbr.rel (%p172) target = $region36
        $region35: #{tpu_custom_call.1} parent=27 // pred_region
          %175 = dma.done [#allocation5], 256
        $region36: #{tpu_custom_call.1} parent=27 // pred_fallthru
          _
        %s176 = sand.u32 %s39, 1
        %s177 = scalar_lea.sflag [#allocation3], %s176
        %s178 = sand.u32 %s39, 1
        %s179 = smul.addr %s178, 32
        %s180 = scalar_lea.vmem [#allocation2], %s179
        %p181 = pneg %p52
        %p182 = pneg %p49
        %p183 = pneg %p73
        %p184 = pneg %p70
        %p185 = pneg %p101
        %p186 = pneg %p98
        %s187 = smul.u32 4, %s22
        %p188 = scmp.lt.s32.totalorder %s21, 1
        %s189 = scalar_select %p188, %s21, 1
        %p190 = scmp.lt.s32.totalorder %s187, 3
        %s191 = scalar_select %p190, %s187, 3
        %s192 = smul.addr %s189, 16
        %s193 = sadd.s32 %s191, %s192
        %s194 = smul.addr %s193, 8
        %s195 = scalar_lea.vmem %s2, %s194
        %s196 = smul.u32 4, %s22
        %s197 = smul.u32 4, %s22
        %p198 = scmp.lt.s32.totalorder %s21, 1
        %s199 = scalar_select %p198, %s21, 1
        %p200 = scmp.lt.s32.totalorder %s197, 3
        %s201 = scalar_select %p200, %s197, 3
        %s202 = smul.addr %s199, 16
        %s203 = sadd.s32 %s201, %s202
        %s204 = smul.addr %s203, 8
        %s205 = scalar_lea.vmem %s2, %s204
        %s206 = smul.u32 4, %s22
        %v207 = vld [vmem:[%s167] sm:$0xff]
        %v208 = vld [vmem:[%s167 + $0x8] sm:$0xff]
        %v209 = vld [vmem:[%s167 + $0x10] sm:$0xff]
        %v210 = vld [vmem:[%s167 + $0x18] sm:$0xff]
        %v211 = vld [vmem:[#allocation4] sm:$0xff]
        %v212 = vld [vmem:[#allocation4 + $0x8] sm:$0xff]
        %vm213 = vcmask 130048
        %v215 = vsel %vm213, %v207, 0
        %v218 = vsel %vm213, %v208, 0
        %v221 = vsel %vm213, %v209, 0
        %v224 = vsel %vm213, %v210, 0
        %226 = vmatprep.subr.mxu0 0.0
        %227 = vmatpush1.msra.mxu0 %v211
        %228 = vmatprep.subr.mxu0 0.0
        %229 = vmatpush1.msra.mxu0 %v212
        %230 = vmatprep.subr.mxu0 0.0
        %231 = vmatpush1.msra.mxu0 0.0
        %232 = vmatprep.subr.mxu0 0.0
        %233 = vmatpush1.msra.mxu0 0.0
        %234 = vmatprep.subr.mxu0 0.0
        %235 = vmatpush1.msra.mxu0 0.0
        %236 = vmatprep.subr.mxu0 0.0
        %237 = vmatpush1.msra.mxu0 0.0
        %238 = vmatprep.subr.mxu0 0.0
        %239 = vmatpush1.msra.mxu0 0.0
        %240 = vmatprep.subr.mxu0 0.0
        %241 = vmatpush1.msra.mxu0 0.0
        %242 = vmatprep.subr.mxu0 0.0
        %243 = vmatpush1.msra.mxu0 0.0
        %244 = vmatprep.subr.mxu0 0.0
        %245 = vmatpush1.msra.mxu0 0.0
        %246 = vmatprep.subr.mxu0 0.0
        %247 = vmatpush1.msra.mxu0 0.0
        %248 = vmatprep.subr.mxu0 0.0
        %249 = vmatpush1.msra.mxu0 0.0
        %250 = vmatprep.subr.mxu0 0.0
        %251 = vmatpush1.msra.mxu0 0.0
        %252 = vmatprep.subr.mxu0 0.0
        %253 = vmatpush1.msra.mxu0 0.0
        %254 = vmatprep.subr.mxu0 0.0
        %255 = vmatpush1.msra.mxu0 0.0
        %256 = vmatprep.subr.mxu0 0.0
        %257 = vmatpush1.msra.mxu0 0.0
        %258 = vmatprep.subr.mxu0 0.0
        %259 = vmatpush1.msra.mxu0 0.0
        %260 = vmatprep.subr.mxu0 0.0
        %261 = vmatpush1.msra.mxu0 0.0
        %262 = vmatprep.subr.mxu0 0.0
        %263 = vmatpush1.msra.mxu0 0.0
        %264 = vmatprep.subr.mxu0 0.0
        %265 = vmatpush1.msra.mxu0 0.0
        %266 = vmatprep.subr.mxu0 0.0
        %267 = vmatpush1.msra.mxu0 0.0
        %268 = vmatprep.subr.mxu0 0.0
        %269 = vmatpush1.msra.mxu0 0.0
        %270 = vmatprep.subr.mxu0 0.0
        %271 = vmatpush1.msra.mxu0 0.0
        %272 = vmatprep.subr.mxu0 0.0
        %273 = vmatpush1.msra.mxu0 0.0
        %274 = vmatprep.subr.mxu0 0.0
        %275 = vmatpush1.msra.mxu0 0.0
        %276 = vmatprep.subr.mxu0 0.0
        %277 = vmatpush1.msra.mxu0 0.0
        %278 = vmatprep.subr.mxu0 0.0
        %279 = vmatpush1.msra.mxu0 0.0
        %280 = vmatprep.subr.mxu0 0.0
        %281 = vmatpush1.msra.mxu0 0.0
        %282 = vmatprep.subr.mxu0 0.0
        %283 = vmatpush1.msra.mxu0 0.0
        %284 = vmatprep.subr.mxu0 0.0
        %285 = vmatpush1.msra.mxu0 0.0
        %286 = vmatprep.subr.mxu0 0.0
        %287 = vmatpush1.msra.mxu0 0.0
        %288 = vmatprep.subr.mxu0 0.0
        %289 = vmatpush1.msra.mxu0 0.0
        %290 = vmatprep.mubr.f32.mxu0 0.0
        %291 = vmatmul.mubr.f32.gmra.mrb[0].mxu0 %v215
        %v292 = vpop.f32.mrb[0].mxu0
        %v293 = vadd.f32 0.0, %v292
        %v294 = vpop.f32.mrb[0].mxu0
        %295 = vmatprep.mubr.f32.mxu0 0.0
        %296 = vmatmul.mubr.f32.gmra.mrb[0].mxu0 %v218
        %v297 = vpop.f32.mrb[0].mxu0
        %v298 = vadd.f32 0.0, %v297
        %v299 = vpop.f32.mrb[0].mxu0
        %300 = vmatprep.mubr.f32.mxu0 0.0
        %301 = vmatmul.mubr.f32.gmra.mrb[0].mxu0 %v221
        %v302 = vpop.f32.mrb[0].mxu0
        %v303 = vadd.f32 0.0, %v302
        %v304 = vpop.f32.mrb[0].mxu0
        %305 = vmatprep.mubr.f32.mxu0 0.0
        %306 = vmatmul.mubr.f32.gmra.mrb[0].mxu0 %v224
        %v307 = vpop.f32.mrb[0].mxu0
        %v308 = vadd.f32 0.0, %v307
        %v309 = vpop.f32.mrb[0].mxu0
        %310 = vdwg.mxu0
        %311 = vrot.lane.b32.xlu0 %v207, 112
        %v312 = vpop.permute.xlu0 %311
        %313 = vrot.lane.b32.xlu0 %v208, 112
        %v314 = vpop.permute.xlu0 %313
        %315 = vrot.lane.b32.xlu0 %v209, 112
        %v316 = vpop.permute.xlu0 %315
        %317 = vrot.lane.b32.xlu0 %v210, 112
        %v318 = vpop.permute.xlu0 %317
        %v319 = vsel %vm213, %v312, 0
        %v321 = vsel %vm213, %v314, 0
        %v323 = vsel %vm213, %v316, 0
        %v325 = vsel %vm213, %v318, 0
        %327 = vmatprep.subr.mxu0 0.0
        %328 = vmatpush1.msra.mxu0 %v211
        %329 = vmatprep.subr.mxu0 0.0
        %330 = vmatpush1.msra.mxu0 %v212
        %331 = vmatprep.subr.mxu0 0.0
        %332 = vmatpush1.msra.mxu0 0.0
        %333 = vmatprep.subr.mxu0 0.0
        %334 = vmatpush1.msra.mxu0 0.0
        %335 = vmatprep.subr.mxu0 0.0
        %336 = vmatpush1.msra.mxu0 0.0
        %337 = vmatprep.subr.mxu0 0.0
        %338 = vmatpush1.msra.mxu0 0.0
        %339 = vmatprep.subr.mxu0 0.0
        %340 = vmatpush1.msra.mxu0 0.0
        %341 = vmatprep.subr.mxu0 0.0
        %342 = vmatpush1.msra.mxu0 0.0
        %343 = vmatprep.subr.mxu0 0.0
        %344 = vmatpush1.msra.mxu0 0.0
        %345 = vmatprep.subr.mxu0 0.0
        %346 = vmatpush1.msra.mxu0 0.0
        %347 = vmatprep.subr.mxu0 0.0
        %348 = vmatpush1.msra.mxu0 0.0
        %349 = vmatprep.subr.mxu0 0.0
        %350 = vmatpush1.msra.mxu0 0.0
        %351 = vmatprep.subr.mxu0 0.0
        %352 = vmatpush1.msra.mxu0 0.0
        %353 = vmatprep.subr.mxu0 0.0
        %354 = vmatpush1.msra.mxu0 0.0
        %355 = vmatprep.subr.mxu0 0.0
        %356 = vmatpush1.msra.mxu0 0.0
        %357 = vmatprep.subr.mxu0 0.0
        %358 = vmatpush1.msra.mxu0 0.0
        %359 = vmatprep.subr.mxu0 0.0
        %360 = vmatpush1.msra.mxu0 0.0
        %361 = vmatprep.subr.mxu0 0.0
        %362 = vmatpush1.msra.mxu0 0.0
        %363 = vmatprep.subr.mxu0 0.0
        %364 = vmatpush1.msra.mxu0 0.0
        %365 = vmatprep.subr.mxu0 0.0
        %366 = vmatpush1.msra.mxu0 0.0
        %367 = vmatprep.subr.mxu0 0.0
        %368 = vmatpush1.msra.mxu0 0.0
        %369 = vmatprep.subr.mxu0 0.0
        %370 = vmatpush1.msra.mxu0 0.0
        %371 = vmatprep.subr.mxu0 0.0
        %372 = vmatpush1.msra.mxu0 0.0
        %373 = vmatprep.subr.mxu0 0.0
        %374 = vmatpush1.msra.mxu0 0.0
        %375 = vmatprep.subr.mxu0 0.0
        %376 = vmatpush1.msra.mxu0 0.0
        %377 = vmatprep.subr.mxu0 0.0
        %378 = vmatpush1.msra.mxu0 0.0
        %379 = vmatprep.subr.mxu0 0.0
        %380 = vmatpush1.msra.mxu0 0.0
        %381 = vmatprep.subr.mxu0 0.0
        %382 = vmatpush1.msra.mxu0 0.0
        %383 = vmatprep.subr.mxu0 0.0
        %384 = vmatpush1.msra.mxu0 0.0
        %385 = vmatprep.subr.mxu0 0.0
        %386 = vmatpush1.msra.mxu0 0.0
        %387 = vmatprep.subr.mxu0 0.0
        %388 = vmatpush1.msra.mxu0 0.0
        %389 = vmatprep.subr.mxu0 0.0
        %390 = vmatpush1.msra.mxu0 0.0
        %391 = vmatprep.mubr.f32.mxu0 0.0
        %392 = vmatmul.mubr.f32.gmra.mrb[0].mxu0 %v319
        %v393 = vpop.f32.mrb[0].mxu0
        %v394 = vadd.f32 0.0, %v393
        %v395 = vpop.f32.mrb[0].mxu0
        %396 = vmatprep.mubr.f32.mxu0 0.0
        %397 = vmatmul.mubr.f32.gmra.mrb[0].mxu0 %v321
        %v398 = vpop.f32.mrb[0].mxu0
        %v399 = vadd.f32 0.0, %v398
        %v400 = vpop.f32.mrb[0].mxu0
        %401 = vmatprep.mubr.f32.mxu0 0.0
        %402 = vmatmul.mubr.f32.gmra.mrb[0].mxu0 %v323
        %v403 = vpop.f32.mrb[0].mxu0
        %v404 = vadd.f32 0.0, %v403
        %v405 = vpop.f32.mrb[0].mxu0
        %406 = vmatprep.mubr.f32.mxu0 0.0
        %407 = vmatmul.mubr.f32.gmra.mrb[0].mxu0 %v325
        %v408 = vpop.f32.mrb[0].mxu0
        %v409 = vadd.f32 0.0, %v408
        %v410 = vpop.f32.mrb[0].mxu0
        %411 = vdwg.mxu0
        %420 = vrot.lane.b32.xlu0 %v293, 120
        %v421 = vpop.permute.xlu0 %420
        %422 = vrot.lane.b32.xlu0 %v298, 120
        %v423 = vpop.permute.xlu0 %422
        %424 = vrot.lane.b32.xlu0 %v303, 120
        %v425 = vpop.permute.xlu0 %424
        %426 = vrot.lane.b32.xlu0 %v308, 120
        %v427 = vpop.permute.xlu0 %426
        %428 = vrot.lane.b32.xlu0 %v394, 120
        %v429 = vpop.permute.xlu0 %428
        %430 = vrot.lane.b32.xlu0 %v399, 120
        %v431 = vpop.permute.xlu0 %430
        %432 = vrot.lane.b32.xlu0 %v404, 120
        %v433 = vpop.permute.xlu0 %432
        %434 = vrot.lane.b32.xlu0 %v409, 120
        %v435 = vpop.permute.xlu0 %434
        %vm444 = vcmask 64512
        %445 = vst.msk [vmem:[%s205] sm:$0xff] %vm444, %v293
        %446 = vst.msk [vmem:[%s205 + $0x8] sm:$0xff] %vm444, %v298
        %447 = vst.msk [vmem:[%s205 + $0x10] sm:$0xff] %vm444, %v303
        %448 = vst.msk [vmem:[%s205 + $0x18] sm:$0xff] %vm444, %v308
        %449 = vst.msk [vmem:[%s205 + $0x20] sm:$0xff] %vm444, %v394
        %450 = vst.msk [vmem:[%s205 + $0x28] sm:$0xff] %vm444, %v399
        %451 = vst.msk [vmem:[%s205 + $0x30] sm:$0xff] %vm444, %v404
        %452 = vst.msk [vmem:[%s205 + $0x38] sm:$0xff] %vm444, %v409
        %453 = vst.msk [vmem:[%s205 + $0x40] sm:$0xff] %vm444, %v421
        %454 = vst.msk [vmem:[%s205 + $0x48] sm:$0xff] %vm444, %v423
        %455 = vst.msk [vmem:[%s205 + $0x50] sm:$0xff] %vm444, %v425
        %456 = vst.msk [vmem:[%s205 + $0x58] sm:$0xff] %vm444, %v427
        %457 = vst.msk [vmem:[%s205 + $0x60] sm:$0xff] %vm444, %v429
        %458 = vst.msk [vmem:[%s205 + $0x68] sm:$0xff] %vm444, %v431
        %459 = vst.msk [vmem:[%s205 + $0x70] sm:$0xff] %vm444, %v433
        %460 = vst.msk [vmem:[%s205 + $0x78] sm:$0xff] %vm444, %v435
        %s461 = smul.u32 4, %s22
        %p462 = scmp.lt.s32.totalorder %s21, 1
        %s463 = scalar_select %p462, %s21, 1
        %p464 = scmp.lt.s32.totalorder %s461, 3
        %s465 = scalar_select %p464, %s461, 3
        %s466 = smul.addr %s463, 16
        %s467 = sadd.s32 %s465, %s466
        %s468 = smul.addr %s467, 8
        %s469 = scalar_lea.vmem %s2, %s468
        // Predicated region
        $region37: #{tpu_custom_call.1} parent=27 // pred_check
          %p470 = pneg %p98
        $region38: #{tpu_custom_call.1} parent=27 // pred_check_branch
          %472 = sbr.rel (%p470) target = $region40
        $region39: #{tpu_custom_call.1} parent=27 // pred_region
          %s473 = smul.u32 4, %s22
        $region40: #{tpu_custom_call.1} parent=27 // pred_fallthru
          _
      $region28: #{tpu_custom_call.1} parent=5 // pred_fallthru
        _
      %p474 = scmp.le.s32.totalorder 2, %s12
      // Predicated region
      $region41: #{tpu_custom_call.1} parent=5 // pred_check
        %p475 = pneg %p474
      $region42: #{tpu_custom_call.1} parent=5 // pred_check_branch
        %477 = sbr.rel (%p475) target = $region44
      $region43: #{tpu_custom_call.1} parent=5 // pred_region
        %s478 = ssub.s32 %s12, 2
        // Predicated region
        $region45: #{tpu_custom_call.1} parent=43 // pred_check
          %p479 = pneg %p104
        $region46: #{tpu_custom_call.1} parent=43 // pred_check_branch
          %481 = sbr.rel (%p479) target = $region48
        $region47: #{tpu_custom_call.1} parent=43 // pred_region
          %s482 = smul.u32 4, %s24
          %p483 = scmp.lt.s32.totalorder %s23, 1
          %s484 = scalar_select %p483, %s23, 1
          %p485 = scmp.lt.s32.totalorder %s482, 3
          %s486 = scalar_select %p485, %s482, 3
          %s487 = smul.addr %s484, 16
          %s488 = sadd.s32 %s486, %s487
          %s489 = smul.addr %s488, 8
          %s490 = scalar_lea.vmem %s2, %s489
        $region48: #{tpu_custom_call.1} parent=43 // pred_fallthru
          _
      $region44: #{tpu_custom_call.1} parent=5 // pred_fallthru
        _
    $region6: #{tpu_custom_call.1} parent=1 // loop_footer
      %s16 = sadd.s32 1, %s12
    $region7: #{tpu_custom_call.1} parent=1 // loop_footer_branch
      %11 = sbr.rel target = $region3
    $region8: #{tpu_custom_call.1} parent=1 // loop_exit
      _
    %491 = vsyncpa [#allocation3], 1
    %s492 = scalar_lea.sflag [#allocation3], 1
    %493 = vsyncpa %s492, 1
    %494 = vsyncpa [#allocation5], 1

</llo_original>
